<compile_context>
chip_gen: v7x
topology: tpu7x:2x2x1
jax: 0.10.0
libtpu: 0.0.40
codegen_flags: <defaults>
</compile_context>

<pallas_src>
import functools
import math

import jax
import jax.numpy as jnp
from jax import lax
from jax.experimental import pallas as pl
from jax.experimental.pallas import tpu as pltpu

LANES = 128


def _wce_stats_kernel(logits_ref, target_ref, sum_p_ref, nll_ref, cnt_ref, *,
                      hw_valid, ignore_index):
    j = pl.program_id(1)

    @pl.when(j == 0)
    def _():
        sum_p_ref[...] = jnp.zeros_like(sum_p_ref)
        nll_ref[...] = jnp.zeros_like(nll_ref)
        cnt_ref[...] = jnp.zeros_like(cnt_ref)

    x = logits_ref[0].astype(jnp.float32)        # (C, R, L), upcast in-kernel
    t = target_ref[0]                            # (R, L) int32
    c_dim, r_dim, l_dim = x.shape

    # Validity mask for the padded tail of the flattened spatial axis
    # (hw_valid is a static Python int baked into the kernel -> a couple of
    #  VPU ops per element, no extra HBM traffic).
    row = lax.broadcasted_iota(jnp.int32, (r_dim, l_dim), 0)
    col = lax.broadcasted_iota(jnp.int32, (r_dim, l_dim), 1)
    pos = (j * r_dim + row) * l_dim + col
    valid = pos < hw_valid
    validf = valid.astype(jnp.float32)

    # Numerically stable softmax / log-softmax over the class axis (axis 0).
    m = jnp.max(x, axis=0, keepdims=True)        # (1, R, L)
    ex = jnp.exp(x - m)
    sum_ex = jnp.sum(ex, axis=0, keepdims=True)
    probs = ex * (1.0 / sum_ex)                  # softmax (reuses ex; no 2nd exp)
    log_p = (x - m) - jnp.log(sum_ex)            # log-softmax

    # target == class indicator (pure VPU; no gather needed).
    cls = lax.broadcasted_iota(jnp.int32, (c_dim, r_dim, l_dim), 0)
    tb = t[None, :, :]
    match = (tb == cls) & (tb != ignore_index) & valid[None, :, :]
    matchf = match.astype(jnp.float32)

    # Vector accumulators (C, 128): reduce only over the row axis per tile,
    # final lane reduce happens once in the wrapper.
    sum_p_ref[...] += jnp.sum(probs * validf[None, :, :], axis=1)[None]
    nll_ref[...] += jnp.sum((-log_p) * matchf, axis=1)[None]
    cnt_ref[...] += jnp.sum(matchf, axis=1)[None]


def weighted_cross_entropy_loss(logits, target, *, weight=None, ignore_index=-1):
    """JAX/Pallas equivalent of WeightedCrossEntropyLoss.forward.

    logits: (N, C, *spatial) float array
    target: (N, *spatial) integer class indices (ignore_index allowed)
    weight: optional (C,) array multiplied into the auto class weights
    """
    n, c = logits.shape[0], logits.shape[1]
    spatial = logits.shape[2:]
    hw = int(math.prod(spatial)) if spatial else 1
    assert target.shape == (n,) + tuple(spatial)

    # Lane-dense (N, C, rows, 128) view.  Row tile sized so one logits block is
    # ~2 MiB (amortizes per-step pipeline overhead; double-buffered it fits the
    # scoped VMEM limits of v5e/v6e/v7x).  Pad the spatial axis only if needed.
    itemsize = jnp.dtype(logits.dtype).itemsize
    rows_needed = max(1, -(-hw // LANES))
    r_cap = max(8, ((2 * 1024 * 1024) // (c * LANES * itemsize)) // 8 * 8)
    if rows_needed <= r_cap:
        r_tile, n_tiles = rows_needed, 1
    else:
        r_tile = r_cap
        n_tiles = -(-rows_needed // r_tile)
    rows_pad = r_tile * n_tiles
    hw_pad = rows_pad * LANES

    x = logits.reshape(n, c, hw)                       # native dtype, no cast
    t = target.reshape(n, hw).astype(jnp.int32)
    if hw_pad != hw:
        x = jnp.pad(x, ((0, 0), (0, 0), (0, hw_pad - hw)))
        t = jnp.pad(t, ((0, 0), (0, hw_pad - hw)), constant_values=ignore_index)
    x = x.reshape(n, c, rows_pad, LANES)
    t = t.reshape(n, rows_pad, LANES)

    kernel = functools.partial(_wce_stats_kernel, hw_valid=hw,
                               ignore_index=int(ignore_index))
    out_sds = jax.ShapeDtypeStruct((n, c, LANES), jnp.float32)

    sum_p, sum_nll, cnt = pl.pallas_call(
        kernel,
        out_shape=(out_sds, out_sds, out_sds),
        grid_spec=pltpu.PrefetchScalarGridSpec(
            num_scalar_prefetch=0,
            grid=(n, n_tiles),
            in_specs=[
                pl.BlockSpec((1, c, r_tile, LANES), lambda i, j: (i, 0, j, 0)),
                pl.BlockSpec((1, r_tile, LANES), lambda i, j: (i, j, 0)),
            ],
            out_specs=[
                pl.BlockSpec((1, c, LANES), lambda i, j: (i, 0, 0)),
                pl.BlockSpec((1, c, LANES), lambda i, j: (i, 0, 0)),
                pl.BlockSpec((1, c, LANES), lambda i, j: (i, 0, 0)),
            ],
        ),
        compiler_params=pltpu.CompilerParams(
            dimension_semantics=("parallel", "arbitrary")),
    )(x, t)

    # O(C) tail: class weights + weighted mean (tiny, plain JAX).
    s_p = jnp.sum(sum_p, axis=(0, 2))                  # (C,) sum of softmax probs
    a_c = jnp.sum(sum_nll, axis=(0, 2))                # (C,) matched NLL sums
    n_c = jnp.sum(cnt, axis=(0, 2))                    # (C,) matched pixel counts
    total_pixels = jnp.float32(n * hw)
    class_w = (total_pixels - s_p) / s_p               # sum(1-p) / sum(p) per class
    if weight is not None:
        class_w = class_w * jnp.asarray(weight, jnp.float32)
    loss = jnp.sum(class_w * a_c) / jnp.sum(class_w * n_c)
    return loss.astype(logits.dtype)


def _wce_ref(logits, target, weight=None, ignore_index=-1):
    """Pure-JAX reference matching the PyTorch module."""
    x = logits.astype(jnp.float32)
    n_cls = x.shape[1]
    probs = jax.nn.softmax(x, axis=1)
    flat = jnp.moveaxis(probs, 1, 0).reshape(n_cls, -1)
    class_w = (1.0 - flat).sum(-1) / flat.sum(-1)
    if weight is not None:
        class_w = class_w * jnp.asarray(weight, jnp.float32)
    logp = jax.nn.log_softmax(x, axis=1)
    valid = (target != ignore_index)
    t_safe = jnp.where(valid, target, 0).astype(jnp.int32)
    nll = -jnp.take_along_axis(logp, t_safe[:, None], axis=1)
    nll = jnp.squeeze(nll, axis=1)
    w = class_w[t_safe] * valid.astype(jnp.float32)
    return jnp.sum(w * nll) / jnp.sum(w)


if __name__ == "__main__":
    key = jax.random.PRNGKey(0)
    k1, k2, k3 = jax.random.split(key, 3)
    N, C, H, W = 2, 4, 16, 16
    logits = jax.random.normal(k1, (N, C, H, W), dtype=jnp.float32) * 2.0
    target = jax.random.randint(k2, (N, H, W), 0, C, dtype=jnp.int32)
    # sprinkle in some ignored pixels to exercise ignore_index=-1
    target = jnp.where(jax.random.bernoulli(k3, 0.05, (N, H, W)), -1, target)

    loss = weighted_cross_entropy_loss(logits, target)
    loss = jax.block_until_ready(loss)

    ref = _wce_ref(logits, target)
    assert jnp.allclose(loss, ref, rtol=1e-5, atol=1e-6), (loss, ref)
    print("KERNEL_OK")
</pallas_src>

<mosaic_0001>
module attributes {stable_mosaic.version = 11 : i64} {
  func.func @_wce_stats_kernel(%arg0: i32, %arg1: i32, %arg2: memref<1x4x2x128xf32, #tpu.memory_space<vmem>>, %arg3: memref<1x2x128xi32, #tpu.memory_space<vmem>>, %arg4: memref<1x4x128xf32, #tpu.memory_space<vmem>>, %arg5: memref<1x4x128xf32, #tpu.memory_space<vmem>>, %arg6: memref<1x4x128xf32, #tpu.memory_space<vmem>>) attributes {dimension_semantics = [#tpu.dimension_semantics<parallel>, #tpu.dimension_semantics<arbitrary>], iteration_bounds = array<i64: 2, 1>, scalar_prefetch = 0 : i64, scratch_operands = 0 : i64, tpu.core_type = #tpu.core_type<tc>, window_params = [{transform_indices = @transform_0, window_bounds = array<i64: 1, 4, 2, 128>}, {transform_indices = @transform_1, window_bounds = array<i64: 1, 2, 128>}, {transform_indices = @transform_2, window_bounds = array<i64: 1, 4, 128>}, {transform_indices = @transform_3, window_bounds = array<i64: 1, 4, 128>}, {transform_indices = @transform_4, window_bounds = array<i64: 1, 4, 128>}]} {
    %c0_i32 = arith.constant 0 : i32
    %0 = arith.cmpi eq, %arg1, %c0_i32 : i32
    %1 = arith.extui %0 : i1 to i32
    %c0_i32_0 = arith.constant 0 : i32
    %2 = arith.cmpi ne, %1, %c0_i32_0 : i32
    scf.if %2 {
      %cst_31 = arith.constant 0.000000e+00 : f32
      %69 = vector.broadcast %cst_31 : f32 to vector<1x4x128xf32>
      %c0_32 = arith.constant 0 : index
      %c0_33 = arith.constant 0 : index
      %c0_34 = arith.constant 0 : index
      %70 = vector.load %arg4[%c0_32, %c0_33, %c0_34] : memref<1x4x128xf32, #tpu.memory_space<vmem>>, vector<1x4x128xf32>
      tpu.vector_store %arg4[%c0_32, %c0_33, %c0_34], %69 {strides = array<i32>} : memref<1x4x128xf32, #tpu.memory_space<vmem>>, vector<1x4x128xf32>,
      %cst_35 = arith.constant 0.000000e+00 : f32
      %71 = vector.broadcast %cst_35 : f32 to vector<1x4x128xf32>
      %c0_36 = arith.constant 0 : index
      %c0_37 = arith.constant 0 : index
      %c0_38 = arith.constant 0 : index
      %72 = vector.load %arg5[%c0_36, %c0_37, %c0_38] : memref<1x4x128xf32, #tpu.memory_space<vmem>>, vector<1x4x128xf32>
      tpu.vector_store %arg5[%c0_36, %c0_37, %c0_38], %71 {strides = array<i32>} : memref<1x4x128xf32, #tpu.memory_space<vmem>>, vector<1x4x128xf32>,
      %cst_39 = arith.constant 0.000000e+00 : f32
      %73 = vector.broadcast %cst_39 : f32 to vector<1x4x128xf32>
      %c0_40 = arith.constant 0 : index
      %c0_41 = arith.constant 0 : index
      %c0_42 = arith.constant 0 : index
      %74 = vector.load %arg6[%c0_40, %c0_41, %c0_42] : memref<1x4x128xf32, #tpu.memory_space<vmem>>, vector<1x4x128xf32>
      tpu.vector_store %arg6[%c0_40, %c0_41, %c0_42], %73 {strides = array<i32>} : memref<1x4x128xf32, #tpu.memory_space<vmem>>, vector<1x4x128xf32>,
    } else {
    }
    %c0 = arith.constant 0 : index
    %c0_1 = arith.constant 0 : index
    %c0_2 = arith.constant 0 : index
    %c0_3 = arith.constant 0 : index
    %3 = vector.load %arg2[%c0, %c0_1, %c0_2, %c0_3] : memref<1x4x2x128xf32, #tpu.memory_space<vmem>>, vector<1x4x2x128xf32>
    %4 = vector.shape_cast %3 : vector<1x4x2x128xf32> to vector<4x2x128xf32>
    %c0_4 = arith.constant 0 : index
    %c0_5 = arith.constant 0 : index
    %c0_6 = arith.constant 0 : index
    %5 = vector.load %arg3[%c0_4, %c0_5, %c0_6] : memref<1x2x128xi32, #tpu.memory_space<vmem>>, vector<1x2x128xi32>
    %6 = vector.shape_cast %5 : vector<1x2x128xi32> to vector<2x128xi32>
    %7 = tpu.iota {dimensions = array<i32: 0>} : vector<2x128xi32>
    %8 = tpu.iota {dimensions = array<i32: 1>} : vector<2x128xi32>
    %c2_i32 = arith.constant 2 : i32
    %9 = arith.muli %arg1, %c2_i32 : i32
    %10 = vector.broadcast %9 : i32 to vector<2x128xi32>
    %11 = arith.addi %10, %7 : vector<2x128xi32>
    %c128_i32 = arith.constant 128 : i32
    %12 = vector.broadcast %c128_i32 : i32 to vector<2x128xi32>
    %13 = arith.muli %11, %12 : vector<2x128xi32>
    %14 = arith.addi %13, %8 : vector<2x128xi32>
    %c256_i32 = arith.constant 256 : i32
    %15 = vector.broadcast %c256_i32 : i32 to vector<2x128xi32>
    %16 = arith.cmpi slt, %14, %15 : vector<2x128xi32>
    %17 = arith.extui %16 : vector<2x128xi1> to vector<2x128xi32>
    %18 = arith.sitofp %17 : vector<2x128xi32> to vector<2x128xf32>
    %cst = arith.constant dense<0xFF800000> : vector<2x128xf32>
    %19 = vector.multi_reduction <maximumf>, %4, %cst [0] : vector<4x2x128xf32> to vector<2x128xf32>
    %20 = vector.shape_cast %19 : vector<2x128xf32> to vector<1x2x128xf32>
    %21 = vector.broadcast %20 : vector<1x2x128xf32> to vector<4x2x128xf32>
    %22 = arith.subf %4, %21 : vector<4x2x128xf32>
    %23 = math.exp %22 : vector<4x2x128xf32>
    %cst_7 = arith.constant dense<0.000000e+00> : vector<2x128xf32>
    %24 = vector.multi_reduction <add>, %23, %cst_7 [0] : vector<4x2x128xf32> to vector<2x128xf32>
    %25 = vector.shape_cast %24 : vector<2x128xf32> to vector<1x2x128xf32>
    %cst_8 = arith.constant 1.000000e+00 : f32
    %26 = vector.broadcast %cst_8 : f32 to vector<1x2x128xf32>
    %27 = arith.divf %26, %25 : vector<1x2x128xf32>
    %28 = vector.broadcast %27 : vector<1x2x128xf32> to vector<4x2x128xf32>
    %29 = arith.mulf %23, %28 : vector<4x2x128xf32>
    %30 = vector.broadcast %20 : vector<1x2x128xf32> to vector<4x2x128xf32>
    %31 = arith.subf %4, %30 : vector<4x2x128xf32>
    %32 = math.log %25 : vector<1x2x128xf32>
    %33 = vector.broadcast %32 : vector<1x2x128xf32> to vector<4x2x128xf32>
    %34 = arith.subf %31, %33 : vector<4x2x128xf32>
    %35 = tpu.iota {dimensions = array<i32: 0>} : vector<4x2x128xi32>
    %36 = vector.shape_cast %6 : vector<2x128xi32> to vector<1x2x128xi32>
    %37 = vector.broadcast %36 : vector<1x2x128xi32> to vector<4x2x128xi32>
    %38 = arith.cmpi eq, %37, %35 : vector<4x2x128xi32>
    %c-1_i32 = arith.constant -1 : i32
    %39 = vector.broadcast %c-1_i32 : i32 to vector<1x2x128xi32>
    %40 = arith.cmpi ne, %36, %39 : vector<1x2x128xi32>
    %41 = vector.broadcast %40 : vector<1x2x128xi1> to vector<4x2x128xi1>
    %42 = arith.andi %38, %41 : vector<4x2x128xi1>
    %43 = vector.shape_cast %16 : vector<2x128xi1> to vector<1x2x128xi1>
    %44 = vector.broadcast %43 : vector<1x2x128xi1> to vector<4x2x128xi1>
    %45 = arith.andi %42, %44 : vector<4x2x128xi1>
    %46 = arith.extui %45 : vector<4x2x128xi1> to vector<4x2x128xi32>
    %47 = arith.sitofp %46 : vector<4x2x128xi32> to vector<4x2x128xf32>
    %c0_9 = arith.constant 0 : index
    %c0_10 = arith.constant 0 : index
    %c0_11 = arith.constant 0 : index
    %48 = vector.load %arg4[%c0_9, %c0_10, %c0_11] : memref<1x4x128xf32, #tpu.memory_space<vmem>>, vector<1x4x128xf32>
    %49 = vector.shape_cast %18 : vector<2x128xf32> to vector<1x2x128xf32>
    %50 = vector.broadcast %49 : vector<1x2x128xf32> to vector<4x2x128xf32>
    %51 = arith.mulf %29, %50 : vector<4x2x128xf32>
    %cst_12 = arith.constant dense<0.000000e+00> : vector<4x128xf32>
    %52 = vector.multi_reduction <add>, %51, %cst_12 [1] : vector<4x2x128xf32> to vector<4x128xf32>
    %53 = vector.shape_cast %52 : vector<4x128xf32> to vector<1x4x128xf32>
    %54 = arith.addf %48, %53 : vector<1x4x128xf32>
    %c0_13 = arith.constant 0 : index
    %c0_14 = arith.constant 0 : index
    %c0_15 = arith.constant 0 : index
    %55 = vector.load %arg4[%c0_13, %c0_14, %c0_15] : memref<1x4x128xf32, #tpu.memory_space<vmem>>, vector<1x4x128xf32>
    tpu.vector_store %arg4[%c0_13, %c0_14, %c0_15], %54 {strides = array<i32>} : memref<1x4x128xf32, #tpu.memory_space<vmem>>, vector<1x4x128xf32>,
    %c0_16 = arith.constant 0 : index
    %c0_17 = arith.constant 0 : index
    %c0_18 = arith.constant 0 : index
    %56 = vector.load %arg5[%c0_16, %c0_17, %c0_18] : memref<1x4x128xf32, #tpu.memory_space<vmem>>, vector<1x4x128xf32>
    %cst_19 = arith.constant 0.000000e+00 : f32
    %57 = vector.broadcast %cst_19 : f32 to vector<4x2x128xf32>
    %58 = arith.subf %57, %34 : vector<4x2x128xf32>
    %59 = arith.mulf %58, %47 : vector<4x2x128xf32>
    %cst_20 = arith.constant dense<0.000000e+00> : vector<4x128xf32>
    %60 = vector.multi_reduction <add>, %59, %cst_20 [1] : vector<4x2x128xf32> to vector<4x128xf32>
    %61 = vector.shape_cast %60 : vector<4x128xf32> to vector<1x4x128xf32>
    %62 = arith.addf %56, %61 : vector<1x4x128xf32>
    %c0_21 = arith.constant 0 : index
    %c0_22 = arith.constant 0 : index
    %c0_23 = arith.constant 0 : index
    %63 = vector.load %arg5[%c0_21, %c0_22, %c0_23] : memref<1x4x128xf32, #tpu.memory_space<vmem>>, vector<1x4x128xf32>
    tpu.vector_store %arg5[%c0_21, %c0_22, %c0_23], %62 {strides = array<i32>} : memref<1x4x128xf32, #tpu.memory_space<vmem>>, vector<1x4x128xf32>,
    %c0_24 = arith.constant 0 : index
    %c0_25 = arith.constant 0 : index
    %c0_26 = arith.constant 0 : index
    %64 = vector.load %arg6[%c0_24, %c0_25, %c0_26] : memref<1x4x128xf32, #tpu.memory_space<vmem>>, vector<1x4x128xf32>
    %cst_27 = arith.constant dense<0.000000e+00> : vector<4x128xf32>
    %65 = vector.multi_reduction <add>, %47, %cst_27 [1] : vector<4x2x128xf32> to vector<4x128xf32>
    %66 = vector.shape_cast %65 : vector<4x128xf32> to vector<1x4x128xf32>
    %67 = arith.addf %64, %66 : vector<1x4x128xf32>
    %c0_28 = arith.constant 0 : index
    %c0_29 = arith.constant 0 : index
    %c0_30 = arith.constant 0 : index
    %68 = vector.load %arg6[%c0_28, %c0_29, %c0_30] : memref<1x4x128xf32, #tpu.memory_space<vmem>>, vector<1x4x128xf32>
    tpu.vector_store %arg6[%c0_28, %c0_29, %c0_30], %67 {strides = array<i32>} : memref<1x4x128xf32, #tpu.memory_space<vmem>>, vector<1x4x128xf32>,
    return
  }
  func.func @transform_0(%arg0: i32, %arg1: i32) -> (i32, i32, i32, i32) {
    %c0_i32 = arith.constant 0 : i32
    %c0_i32_0 = arith.constant 0 : i32
    %c0_i32_1 = arith.constant 0 : i32
    return %arg0, %c0_i32, %arg1, %c0_i32_0 : i32, i32, i32, i32
  }
  func.func @transform_1(%arg0: i32, %arg1: i32) -> (i32, i32, i32) {
    %c0_i32 = arith.constant 0 : i32
    %c0_i32_0 = arith.constant 0 : i32
    return %arg0, %arg1, %c0_i32 : i32, i32, i32
  }
  func.func @transform_2(%arg0: i32, %arg1: i32) -> (i32, i32, i32) {
    %c0_i32 = arith.constant 0 : i32
    %c0_i32_0 = arith.constant 0 : i32
    %c0_i32_1 = arith.constant 0 : i32
    return %arg0, %c0_i32, %c0_i32_0 : i32, i32, i32
  }
  func.func @transform_3(%arg0: i32, %arg1: i32) -> (i32, i32, i32) {
    %c0_i32 = arith.constant 0 : i32
    %c0_i32_0 = arith.constant 0 : i32
    %c0_i32_1 = arith.constant 0 : i32
    return %arg0, %c0_i32, %c0_i32_0 : i32, i32, i32
  }
  func.func @transform_4(%arg0: i32, %arg1: i32) -> (i32, i32, i32) {
    %c0_i32 = arith.constant 0 : i32
    %c0_i32_0 = arith.constant 0 : i32
    %c0_i32_1 = arith.constant 0 : i32
    return %arg0, %c0_i32, %c0_i32_0 : i32, i32, i32
  }
}

</mosaic_0001>

<llo_original>
// kernel: tpu_custom_call.1
$region0: #{tpu_custom_call.1}
  #allocation0 [shape = 'u32[]', space=smem, size = 0x4, offset = 0x4, fixed_abs, tag = 'smem constant byte address 0x4 - core index']
  #allocation1 [shape = 'u32[144,128]{1,0:T(1,128)}', space=vmem, size = 0x12000, scoped, tag = 'internal scratch']
  %s0 = inlined_call_operand.hbm [shape: f32[2,4,2,128], index: 0, kind: input, shape index: {}]
  %s1 = inlined_call_operand.hbm [shape: s32[2,2,128], index: 1, kind: input, shape index: {}]
  %s2 = inlined_call_operand.hbm [shape: f32[2,4,128], index: 2, kind: output, shape index: {0}]
  %s3 = inlined_call_operand.hbm [shape: f32[2,4,128], index: 3, kind: output, shape index: {1}]
  %s4 = inlined_call_operand.hbm [shape: f32[2,4,128], index: 4, kind: output, shape index: {2}]
  %5 = xla_tuple %s2, %s3, %s4
  %s6 = sld [smem:[#allocation0]]
  $region69: #{tpu_custom_call.1} parent=0
    _
  %s8 = ssub.s32 1, %s6
  %s9 = scalar_select 0, %s8, %s6
  $region1: #{tpu_custom_call.1} parent=0
    #allocation2 [shape = 'u8[8192]{0}', space=vmem, size = 0x2000, scoped, tag = 'input window, operand 0']
    #allocation3 [shape = 's32[2]{0}', space=sflag, size = 0x8, scoped, tag = 'scoped memory for tpu_custom_call.1']
    #allocation4 [shape = 's32[2]{0}', space=sflag, size = 0x8, scoped, tag = 'scoped memory for tpu_custom_call.1']
    #allocation5 [shape = 'u8[2048]{0}', space=vmem, size = 0x800, scoped, tag = 'input window, operand 1']
    #allocation6 [shape = 's32[2]{0}', space=sflag, size = 0x8, scoped, tag = 'scoped memory for tpu_custom_call.1']
    #allocation7 [shape = 'u8[4096]{0}', space=vmem, size = 0x1000, scoped, tag = 'output window, operand 0']
    #allocation8 [shape = 'u8[4096]{0}', space=vmem, size = 0x1000, scoped, tag = 'output window, operand 1']
    #allocation9 [shape = 's32[2]{0}', space=sflag, size = 0x8, scoped, tag = 'scoped memory for tpu_custom_call.1']
    #allocation10 [shape = 'u8[4096]{0}', space=vmem, size = 0x1000, scoped, tag = 'output window, operand 2']
    %10 = vsyncpa [#allocation3], 0
    %s11 = scalar_lea.sflag [#allocation3], 1
    %12 = vsyncpa %s11, 0
    %13 = vsyncpa [#allocation6], 0
    %s14 = scalar_lea.sflag [#allocation6], 1
    %15 = vsyncpa %s14, 0
    %16 = vsyncpa [#allocation4], 0
    %s17 = scalar_lea.sflag [#allocation4], 1
    %18 = vsyncpa %s17, 0
    %19 = vsyncpa [#allocation9], 0
    %s20 = scalar_lea.sflag [#allocation9], 1
    %21 = vsyncpa %s20, 0
    loop: start=0, step=1, limit=4
    $region2: #{tpu_custom_call.1} parent=1 // loop_pre_header
      _
    $region3: #{tpu_custom_call.1} parent=1 // loop_header
      %s23 = sphi 0, %s27
      %p24 = scmp.ge.s32.totalorder %s23, 4
      %s30 = sphi 0, %s42
      %s31 = sphi 0, %s38
      %s32 = sphi 0, %s30
      %s33 = sphi 0, %s31
      %s34 = sphi 0, %s32
      %s35 = sphi 0, %s33
      %s47 = sphi 0, %s49
      %s50 = sphi 0, %s47
      %s51 = sphi 0, %s50
      %s67 = sphi 0, %s51
      %s75 = sphi 0, %s77
      %s78 = sphi 0, %s75
      %s79 = sphi 0, %s78
      %s95 = sphi 0, %s79
      %s101 = sphi 0, %s103
      %s104 = sphi 0, %s101
      %s105 = sphi 0, %s104
      %s121 = sphi 0, %s105
      %s127 = sphi 0, %s129
      %s130 = sphi 0, %s127
      %s131 = sphi 0, %s130
      %s147 = sphi 0, %s131
      %s153 = sphi 0, %s155
      %s156 = sphi 0, %s153
      %s157 = sphi 0, %s156
      %s173 = sphi 0, %s157
    $region4: #{tpu_custom_call.1} parent=1 // loop_header_branch
      %26 = sbr.rel (%p24) target = $region8
    $region5: #{tpu_custom_call.1} parent=1 // loop_body
      %s28 = ssub.s32 %s23, 1
      %s29 = ssub.s32 %s23, 2
      %s36 = sadd.s32 1, %s31
      %p37 = scmp.ge.s32.totalorder %s36, 1
      %s38 = scalar_select %p37, 0, %s36
      %s39 = sadd.s32 1, %s30
      %s40 = scalar_select %p37, %s39, %s30
      %p41 = scmp.ge.s32.totalorder %s40, 2
      %s42 = scalar_select %p41, 0, %s40
      %s43 = ssub.s32 %s30, %s42
      %s44 = ssub.s32 %s31, %s38
      %s45 = sor.u32 %s43, %s44
      %p46 = scmp.eq.s32.totalorder %s45, 0
      %s48 = sadd.s32 %s47, 1
      %s49 = scalar_select %p46, %s47, %s48
      %p52 = pneg %p46
      %p53 = scmp.eq.s32.totalorder %s23, 1
      %p54 = por %p52, %p53
      %p55 = scmp.ne.s32.totalorder %s47, %s50
      %p56 = scmp.eq.s32.totalorder %s23, 0
      %p57 = por %p55, %p56
      %p58 = scmp.ne.s32.totalorder %s47, %s50
      %p59 = scmp.eq.s32.totalorder %s28, 1
      %p60 = por %p58, %p59
      %p61 = scmp.ne.s32.totalorder %s50, %s51
      %p62 = scmp.eq.s32.totalorder %s28, 0
      %p63 = por %p61, %p62
      %p64 = scmp.ne.s32.totalorder %s50, %s51
      %p65 = scmp.eq.s32.totalorder %s29, 1
      %p66 = por %p64, %p65
      %p68 = scmp.ne.s32.totalorder %s51, %s67
      %p69 = scmp.eq.s32.totalorder %s29, 0
      %p70 = por %p68, %p69
      %s71 = ssub.s32 %s30, %s42
      %s72 = ssub.s32 %s31, %s38
      %s73 = sor.u32 %s71, %s72
      %p74 = scmp.eq.s32.totalorder %s73, 0
      %s76 = sadd.s32 %s75, 1
      %s77 = scalar_select %p74, %s75, %s76
      %p80 = pneg %p74
      %p81 = scmp.eq.s32.totalorder %s23, 1
      %p82 = por %p80, %p81
      %p83 = scmp.ne.s32.totalorder %s75, %s78
      %p84 = scmp.eq.s32.totalorder %s23, 0
      %p85 = por %p83, %p84
      %p86 = scmp.ne.s32.totalorder %s75, %s78
      %p87 = scmp.eq.s32.totalorder %s28, 1
      %p88 = por %p86, %p87
      %p89 = scmp.ne.s32.totalorder %s78, %s79
      %p90 = scmp.eq.s32.totalorder %s28, 0
      %p91 = por %p89, %p90
      %p92 = scmp.ne.s32.totalorder %s78, %s79
      %p93 = scmp.eq.s32.totalorder %s29, 1
      %p94 = por %p92, %p93
      %p96 = scmp.ne.s32.totalorder %s79, %s95
      %p97 = scmp.eq.s32.totalorder %s29, 0
      %p98 = por %p96, %p97
      %s99 = ssub.s32 %s30, %s42
      %p100 = scmp.eq.s32.totalorder %s99, 0
      %s102 = sadd.s32 %s101, 1
      %s103 = scalar_select %p100, %s101, %s102
      %p106 = pneg %p100
      %p107 = scmp.eq.s32.totalorder %s23, 1
      %p108 = por %p106, %p107
      %p109 = scmp.ne.s32.totalorder %s101, %s104
      %p110 = scmp.eq.s32.totalorder %s23, 0
      %p111 = por %p109, %p110
      %p112 = scmp.ne.s32.totalorder %s101, %s104
      %p113 = scmp.eq.s32.totalorder %s28, 1
      %p114 = por %p112, %p113
      %p115 = scmp.ne.s32.totalorder %s104, %s105
      %p116 = scmp.eq.s32.totalorder %s28, 0
      %p117 = por %p115, %p116
      %p118 = scmp.ne.s32.totalorder %s104, %s105
      %p119 = scmp.eq.s32.totalorder %s29, 1
      %p120 = por %p118, %p119
      %p122 = scmp.ne.s32.totalorder %s105, %s121
      %p123 = scmp.eq.s32.totalorder %s29, 0
      %p124 = por %p122, %p123
      %s125 = ssub.s32 %s30, %s42
      %p126 = scmp.eq.s32.totalorder %s125, 0
      %s128 = sadd.s32 %s127, 1
      %s129 = scalar_select %p126, %s127, %s128
      %p132 = pneg %p126
      %p133 = scmp.eq.s32.totalorder %s23, 1
      %p134 = por %p132, %p133
      %p135 = scmp.ne.s32.totalorder %s127, %s130
      %p136 = scmp.eq.s32.totalorder %s23, 0
      %p137 = por %p135, %p136
      %p138 = scmp.ne.s32.totalorder %s127, %s130
      %p139 = scmp.eq.s32.totalorder %s28, 1
      %p140 = por %p138, %p139
      %p141 = scmp.ne.s32.totalorder %s130, %s131
      %p142 = scmp.eq.s32.totalorder %s28, 0
      %p143 = por %p141, %p142
      %p144 = scmp.ne.s32.totalorder %s130, %s131
      %p145 = scmp.eq.s32.totalorder %s29, 1
      %p146 = por %p144, %p145
      %p148 = scmp.ne.s32.totalorder %s131, %s147
      %p149 = scmp.eq.s32.totalorder %s29, 0
      %p150 = por %p148, %p149
      %s151 = ssub.s32 %s30, %s42
      %p152 = scmp.eq.s32.totalorder %s151, 0
      %s154 = sadd.s32 %s153, 1
      %s155 = scalar_select %p152, %s153, %s154
      %p158 = pneg %p152
      %p159 = scmp.eq.s32.totalorder %s23, 1
      %p160 = por %p158, %p159
      %p161 = scmp.ne.s32.totalorder %s153, %s156
      %p162 = scmp.eq.s32.totalorder %s23, 0
      %p163 = por %p161, %p162
      %p164 = scmp.ne.s32.totalorder %s153, %s156
      %p165 = scmp.eq.s32.totalorder %s28, 1
      %p166 = por %p164, %p165
      %p167 = scmp.ne.s32.totalorder %s156, %s157
      %p168 = scmp.eq.s32.totalorder %s28, 0
      %p169 = por %p167, %p168
      %p170 = scmp.ne.s32.totalorder %s156, %s157
      %p171 = scmp.eq.s32.totalorder %s29, 1
      %p172 = por %p170, %p171
      %p174 = scmp.ne.s32.totalorder %s157, %s173
      %p175 = scmp.eq.s32.totalorder %s29, 0
      %p176 = por %p174, %p175
      %p177 = scmp.le.s32.totalorder 1, %s23
      %p178 = scmp.lt.s32.totalorder %s23, 3
      %p179 = pnand %p177, %p178
      %p180 = pneg %p179
      // Predicated region
      $region9: #{tpu_custom_call.1} parent=5 // pred_check
        _
      $region10: #{tpu_custom_call.1} parent=5 // pred_check_branch
        %182 = sbr.rel (%p179) target = $region12
      $region11: #{tpu_custom_call.1} parent=5 // pred_region
        %s183 = ssub.s32 %s23, 1
      $region12: #{tpu_custom_call.1} parent=5 // pred_fallthru
        _
      %p184 = scmp.lt.s32.totalorder %s23, 2
      // Predicated region
      $region13: #{tpu_custom_call.1} parent=5 // pred_check
        %p185 = pneg %p184
      $region14: #{tpu_custom_call.1} parent=5 // pred_check_branch
        %187 = sbr.rel (%p185) target = $region16
      $region15: #{tpu_custom_call.1} parent=5 // pred_region
        // Predicated region
        $region17: #{tpu_custom_call.1} parent=15 // pred_check
          %p188 = pneg %p57
        $region18: #{tpu_custom_call.1} parent=15 // pred_check_branch
          %190 = sbr.rel (%p188) target = $region20
        $region19: #{tpu_custom_call.1} parent=15 // pred_region
          %s191 = sand.u32 %s47, 1
          %s192 = scalar_lea.sflag [#allocation3], %s191
          %s193 = sand.u32 %s47, 1
          %s194 = smul.addr %s193, 8
          %s195 = scalar_lea.vmem [#allocation2], %s194
          %s197 = ssub.s32 128, 128
          %198 = vsyncadd %s192, %s197
          %s199 = smul.addr %s30, 4
          %s200 = sadd.s32 %s31, %s199
          %s201 = smul.addr %s200, 32
          %s202 = scalar_lea.hbm %s0, %s201
          %s203 = sshll.u32 %s195, 4
          %s204 = int_to_ptr.vmem [resolvable:$true] %s203
          %209 = dma.hbm_to_vmem [thread:$0]  %s202, 128, %s204, %s192, 32, 32, 2
        $region20: #{tpu_custom_call.1} parent=15 // pred_fallthru
          _
        // Predicated region
        $region21: #{tpu_custom_call.1} parent=15 // pred_check
          %p210 = pneg %p85
        $region22: #{tpu_custom_call.1} parent=15 // pred_check_branch
          %212 = sbr.rel (%p210) target = $region24
        $region23: #{tpu_custom_call.1} parent=15 // pred_region
          %s213 = sand.u32 %s75, 1
          %s214 = scalar_lea.sflag [#allocation6], %s213
          %s215 = sand.u32 %s75, 1
          %s216 = smul.addr %s215, 2
          %s217 = scalar_lea.vmem [#allocation5], %s216
          %s219 = ssub.s32 32, 32
          %220 = vsyncadd %s214, %s219
          %s221 = sadd.s32 %s31, %s30
          %s222 = smul.addr %s221, 32
          %s223 = scalar_lea.hbm %s1, %s222
          %s225 = sshll.u32 %s217, 4
          %s226 = int_to_ptr.vmem [resolvable:$true] %s225
          %228 = dma.hbm_to_vmem [thread:$0]  %s223, 32, %s226, %s214
        $region24: #{tpu_custom_call.1} parent=15 // pred_fallthru
          _
      $region16: #{tpu_custom_call.1} parent=5 // pred_fallthru
        _
      %p229 = scmp.le.s32.totalorder 1, %s23
      %p230 = scmp.lt.s32.totalorder %s23, 3
      %p231 = pnand %p229, %p230
      %p232 = pneg %p231
      // Predicated region
      $region25: #{tpu_custom_call.1} parent=5 // pred_check
        _
      $region26: #{tpu_custom_call.1} parent=5 // pred_check_branch
        %234 = sbr.rel (%p231) target = $region28
      $region27: #{tpu_custom_call.1} parent=5 // pred_region
        %s235 = ssub.s32 %s23, 1
        %s236 = sand.u32 %s50, 1
        %s237 = scalar_lea.sflag [#allocation3], %s236
        %s238 = sand.u32 %s50, 1
        %s239 = smul.addr %s238, 8
        %s240 = scalar_lea.vmem [#allocation2], %s239
        // Predicated region
        $region29: #{tpu_custom_call.1} parent=27 // pred_check
          %p241 = pneg %p63
        $region30: #{tpu_custom_call.1} parent=27 // pred_check_branch
          %243 = sbr.rel (%p241) target = $region32
        $region31: #{tpu_custom_call.1} parent=27 // pred_region
          %244 = dma.done %s237, 128
        $region32: #{tpu_custom_call.1} parent=27 // pred_fallthru
          _
        %s245 = sand.u32 %s78, 1
        %s246 = scalar_lea.sflag [#allocation6], %s245
        %s247 = sand.u32 %s78, 1
        %s248 = smul.addr %s247, 2
        %s249 = scalar_lea.vmem [#allocation5], %s248
        // Predicated region
        $region33: #{tpu_custom_call.1} parent=27 // pred_check
          %p250 = pneg %p91
        $region34: #{tpu_custom_call.1} parent=27 // pred_check_branch
          %252 = sbr.rel (%p250) target = $region36
        $region35: #{tpu_custom_call.1} parent=27 // pred_region
          %253 = dma.done %s246, 32
        $region36: #{tpu_custom_call.1} parent=27 // pred_fallthru
          _
        %s254 = sand.u32 %s50, 1
        %s255 = scalar_lea.sflag [#allocation3], %s254
        %s256 = sand.u32 %s50, 1
        %s257 = smul.addr %s256, 8
        %s258 = scalar_lea.vmem [#allocation2], %s257
        %p259 = pneg %p63
        %p260 = pneg %p60
        %s261 = sand.u32 %s78, 1
        %s262 = scalar_lea.sflag [#allocation6], %s261
        %s263 = sand.u32 %s78, 1
        %s264 = smul.addr %s263, 2
        %s265 = scalar_lea.vmem [#allocation5], %s264
        %p266 = pneg %p91
        %p267 = pneg %p88
        %p268 = pneg %p117
        %p269 = pneg %p114
        %s270 = sand.u32 %s104, 1
        %s271 = scalar_lea.sflag [#allocation4], %s270
        %s272 = sand.u32 %s104, 1
        %s273 = smul.addr %s272, 4
        %s274 = scalar_lea.vmem [#allocation7], %s273
        %p275 = pneg %p143
        %p276 = pneg %p140
        %s277 = sand.u32 %s28, 1
        %s278 = scalar_lea.sflag [#allocation9], %s277
        %s279 = sand.u32 %s130, 1
        %s280 = smul.addr %s279, 4
        %s281 = scalar_lea.vmem [#allocation8], %s280
        %p282 = pneg %p169
        %p283 = pneg %p166
        %s284 = sand.u32 %s28, 1
        %s285 = scalar_lea.sflag [#allocation9], %s284
        %s286 = sand.u32 %s156, 1
        %s287 = smul.addr %s286, 4
        %s288 = scalar_lea.vmem [#allocation10], %s287
        %p289 = scmp.eq.s32.totalorder %s33, 0
        // Predicated region
        $region37: #{tpu_custom_call.1} parent=27 // pred_check
          %p290 = pneg %p289
        $region38: #{tpu_custom_call.1} parent=27 // pred_check_branch
          %292 = sbr.rel (%p290) target = $region40
        $region39: #{tpu_custom_call.1} parent=27 // pred_region
          %293 = vst [vmem:[%s274] sm:$0xf] 0.0
          %294 = vst [vmem:[%s281] sm:$0xf] 0.0
          %295 = vst [vmem:[%s288] sm:$0xf] 0.0
        $region40: #{tpu_custom_call.1} parent=27 // pred_fallthru
          _
        %v296 = vld [vmem:[%s240] sm:$0x3]
        %v297 = vld [vmem:[%s240 + $0x2] sm:$0x3]
        %v298 = vld [vmem:[%s240 + $0x4] sm:$0x3]
        %v299 = vld [vmem:[%s240 + $0x6] sm:$0x3]
        %v300 = vld [vmem:[%s249] sm:$0x3]
        %v301 = vlaneseq
        %v302 = vshrl.u32 %v301, 7
        %v303 = vlaneseq
        %v304 = vand.u32 %v303, 127
        %s305 = smul.u32 %s33, 2
        %v306 = vstv %s305
        %v307 = vadd.s32 %v306, %v302
        %v308 = vmul.u32 %v307, 128
        %v309 = vadd.s32 %v308, %v304
        %vm310 = vcmp.lt.s32.totalorder %v309, 256
        %v311 = vsel %vm310, 1, 0
        %v312 = vcvt.s32.f32 %v311
        %vm313 = vcmask 1041408
        %v314 = vsel %vm313, %v296, -inf
        %v315 = vsel %vm313, %v297, -inf
        %v316 = vsel %vm313, %v298, -inf
        %v317 = vsel %vm313, %v299, -inf
        %v318 = vmax.f32 %v314, %v315
        %v319 = vmax.f32 %v316, %v317
        %v320 = vmax.f32 %v318, %v319
        %v321 = vsub.f32 %v296, %v320
        %v322 = vsub.f32 %v297, %v320
        %v323 = vsub.f32 %v298, %v320
        %v324 = vsub.f32 %v299, %v320
        %v325 = vmul.f32 %v321, 1.442695
        %v326 = vpow.pop %v325
        %v327 = vmul.f32 %v322, 1.442695
        %v328 = vpow.pop %v327
        %v329 = vmul.f32 %v323, 1.442695
        %v330 = vpow.pop %v329
        %v331 = vmul.f32 %v324, 1.442695
        %v332 = vpow.pop %v331
        %v333 = vsel %vm313, %v326, 0.0
        %v334 = vsel %vm313, %v328, 0.0
        %v335 = vadd.f32 %v333, %v334
        %v336 = vsel %vm313, %v330, 0.0
        %v337 = vadd.f32 %v335, %v336
        %v338 = vsel %vm313, %v332, 0.0
        %v339 = vadd.f32 %v337, %v338
        %v340 = vrcp.pop %v339
        %v341 = vmul.f32 1.0, %v340
        %v342 = vmul.f32 %v326, %v341
        %v343 = vmul.f32 %v328, %v341
        %v344 = vmul.f32 %v330, %v341
        %v345 = vmul.f32 %v332, %v341
        %v346 = vlog2.pop %v339
        %v347 = vmul.f32 %v346, 0.6931472
        %v348 = vsub.f32 %v321, %v347
        %v349 = vsub.f32 %v322, %v347
        %v350 = vsub.f32 %v323, %v347
        %v351 = vsub.f32 %v324, %v347
        %vm352 = vcmp.eq.s32.totalorder %v300, 0
        %vm353 = vcmp.eq.s32.totalorder %v300, 1
        %vm354 = vcmp.eq.s32.totalorder %v300, 2
        %vm355 = vcmp.eq.s32.totalorder %v300, 3
        %vm356 = vcmp.ne.s32.totalorder %v300, 4294967295
        %v357 = vsel %vm356, 1, 0
        %vm358 = vcmp.eq.s32.totalorder %v357, 1
        %vm359 = vmand %vm352, %vm358
        %vm360 = vmand %vm353, %vm358
        %vm361 = vmand %vm354, %vm358
        %vm362 = vmand %vm355, %vm358
        %vm363 = vcmp.eq.s32.totalorder %v311, 1
        %vm364 = vmand %vm359, %vm363
        %vm365 = vmand %vm360, %vm363
        %vm366 = vmand %vm361, %vm363
        %vm367 = vmand %vm362, %vm363
        %v368 = vsel %vm364, 1, 0
        %v369 = vsel %vm365, 1, 0
        %v370 = vsel %vm366, 1, 0
        %v371 = vsel %vm367, 1, 0
        %v372 = vcvt.s32.f32 %v368
        %v373 = vcvt.s32.f32 %v369
        %v374 = vcvt.s32.f32 %v370
        %v375 = vcvt.s32.f32 %v371
        %v376 = vld [vmem:[%s274] sm:$0xf]
        %v377 = vmul.f32 %v342, %v312
        %v378 = vmul.f32 %v343, %v312
        %v379 = vmul.f32 %v344, %v312
        %v380 = vmul.f32 %v345, %v312
        %v381 = vsel %vm313, %v377, 0.0
        %v382 = vrot.slane %v381, 4
        %v383 = vadd.f32 %v381, %v382
        %v384 = vrot.slane %v383, 2
        %v385 = vadd.f32 %v383, %v384
        %v386 = vrot.slane %v385, 1
        %v387 = vadd.f32 %v385, %v386
        %v388 = vsel %vm313, %v378, 0.0
        %v389 = vrot.slane %v388, 4
        %v390 = vadd.f32 %v388, %v389
        %v391 = vrot.slane %v390, 2
        %v392 = vadd.f32 %v390, %v391
        %v393 = vrot.slane %v392, 1
        %v394 = vadd.f32 %v392, %v393
        %v395 = vsel %vm313, %v379, 0.0
        %v396 = vrot.slane %v395, 4
        %v397 = vadd.f32 %v395, %v396
        %v398 = vrot.slane %v397, 2
        %v399 = vadd.f32 %v397, %v398
        %v400 = vrot.slane %v399, 1
        %v401 = vadd.f32 %v399, %v400
        %v402 = vsel %vm313, %v380, 0.0
        %v403 = vrot.slane %v402, 4
        %v404 = vadd.f32 %v402, %v403
        %v405 = vrot.slane %v404, 2
        %v406 = vadd.f32 %v404, %v405
        %v407 = vrot.slane %v406, 1
        %v408 = vadd.f32 %v406, %v407
        %vm413 = vcmask 1041409
        %v414 = vsel %vm413, %v394, %v387
        %vm415 = vcmask 1042434
        %v416 = vsel %vm415, %v401, %v414
        %vm417 = vcmask 1043459
        %v418 = vsel %vm417, %v408, %v416
        %v420 = vadd.f32 %v376, %v418
        %421 = vst [vmem:[%s274] sm:$0xf] %v420
        %v422 = vld [vmem:[%s281] sm:$0xf]
        %v423 = vsub.f32 0.0, %v348
        %v424 = vsub.f32 0.0, %v349
        %v425 = vsub.f32 0.0, %v350
        %v426 = vsub.f32 0.0, %v351
        %v427 = vmul.f32 %v423, %v372
        %v428 = vmul.f32 %v424, %v373
        %v429 = vmul.f32 %v425, %v374
        %v430 = vmul.f32 %v426, %v375
        %v431 = vsel %vm313, %v427, 0.0
        %v432 = vrot.slane %v431, 4
        %v433 = vadd.f32 %v431, %v432
        %v434 = vrot.slane %v433, 2
        %v435 = vadd.f32 %v433, %v434
        %v436 = vrot.slane %v435, 1
        %v437 = vadd.f32 %v435, %v436
        %v438 = vsel %vm313, %v428, 0.0
        %v439 = vrot.slane %v438, 4
        %v440 = vadd.f32 %v438, %v439
        %v441 = vrot.slane %v440, 2
        %v442 = vadd.f32 %v440, %v441
        %v443 = vrot.slane %v442, 1
        %v444 = vadd.f32 %v442, %v443
        %v445 = vsel %vm313, %v429, 0.0
        %v446 = vrot.slane %v445, 4
        %v447 = vadd.f32 %v445, %v446
        %v448 = vrot.slane %v447, 2
        %v449 = vadd.f32 %v447, %v448
        %v450 = vrot.slane %v449, 1
        %v451 = vadd.f32 %v449, %v450
        %v452 = vsel %vm313, %v430, 0.0
        %v453 = vrot.slane %v452, 4
        %v454 = vadd.f32 %v452, %v453
        %v455 = vrot.slane %v454, 2
        %v456 = vadd.f32 %v454, %v455
        %v457 = vrot.slane %v456, 1
        %v458 = vadd.f32 %v456, %v457
        %v463 = vsel %vm413, %v444, %v437
        %v464 = vsel %vm415, %v451, %v463
        %v465 = vsel %vm417, %v458, %v464
        %v467 = vadd.f32 %v422, %v465
        %468 = vst [vmem:[%s281] sm:$0xf] %v467
        %v469 = vld [vmem:[%s288] sm:$0xf]
        %v470 = vsel %vm313, %v372, 0.0
        %v471 = vrot.slane %v470, 4
        %v472 = vadd.f32 %v470, %v471
        %v473 = vrot.slane %v472, 2
        %v474 = vadd.f32 %v472, %v473
        %v475 = vrot.slane %v474, 1
        %v476 = vadd.f32 %v474, %v475
        %v477 = vsel %vm313, %v373, 0.0
        %v478 = vrot.slane %v477, 4
        %v479 = vadd.f32 %v477, %v478
        %v480 = vrot.slane %v479, 2
        %v481 = vadd.f32 %v479, %v480
        %v482 = vrot.slane %v481, 1
        %v483 = vadd.f32 %v481, %v482
        %v484 = vsel %vm313, %v374, 0.0
        %v485 = vrot.slane %v484, 4
        %v486 = vadd.f32 %v484, %v485
        %v487 = vrot.slane %v486, 2
        %v488 = vadd.f32 %v486, %v487
        %v489 = vrot.slane %v488, 1
        %v490 = vadd.f32 %v488, %v489
        %v491 = vsel %vm313, %v375, 0.0
        %v492 = vrot.slane %v491, 4
        %v493 = vadd.f32 %v491, %v492
        %v494 = vrot.slane %v493, 2
        %v495 = vadd.f32 %v493, %v494
        %v496 = vrot.slane %v495, 1
        %v497 = vadd.f32 %v495, %v496
        %v502 = vsel %vm413, %v483, %v476
        %v503 = vsel %vm415, %v490, %v502
        %v504 = vsel %vm417, %v497, %v503
        %v506 = vadd.f32 %v469, %v504
        %507 = vst [vmem:[%s288] sm:$0xf] %v506
        %s508 = sand.u32 %s104, 1
        %s509 = scalar_lea.sflag [#allocation4], %s508
        %s510 = sand.u32 %s104, 1
        %s511 = smul.addr %s510, 4
        %s512 = scalar_lea.vmem [#allocation7], %s511
        %s513 = sand.u32 %s28, 1
        %s514 = scalar_lea.sflag [#allocation9], %s513
        %s515 = sand.u32 %s130, 1
        %s516 = smul.addr %s515, 4
        %s517 = scalar_lea.vmem [#allocation8], %s516
        %s518 = sand.u32 %s28, 1
        %s519 = scalar_lea.sflag [#allocation9], %s518
        %s520 = sand.u32 %s156, 1
        %s521 = smul.addr %s520, 4
        %s522 = scalar_lea.vmem [#allocation10], %s521
        // Predicated region
        $region41: #{tpu_custom_call.1} parent=27 // pred_check
          %p523 = pneg %p114
        $region42: #{tpu_custom_call.1} parent=27 // pred_check_branch
          %525 = sbr.rel (%p523) target = $region44
        $region43: #{tpu_custom_call.1} parent=27 // pred_region
          %s527 = ssub.s32 64, 64
          %528 = vsyncadd %s509, %s527
          %s529 = smul.addr %s32, 64
          %s530 = scalar_lea.hbm %s2, %s529
          %s532 = sshll.u32 %s512, 4
          %s533 = int_to_ptr.vmem [resolvable:$true] %s532
          %535 = dma.vmem_to_hbm [thread:$0]  %s533, 64, %s530, %s509
        $region44: #{tpu_custom_call.1} parent=27 // pred_fallthru
          _
        // Predicated region
        $region45: #{tpu_custom_call.1} parent=27 // pred_check
          %p536 = pneg %p140
        $region46: #{tpu_custom_call.1} parent=27 // pred_check_branch
          %538 = sbr.rel (%p536) target = $region48
        $region47: #{tpu_custom_call.1} parent=27 // pred_region
          %s540 = ssub.s32 64, 64
          %541 = vsyncadd %s514, %s540
          %s542 = smul.addr %s32, 64
          %s543 = scalar_lea.hbm %s3, %s542
          %s545 = sshll.u32 %s517, 4
          %s546 = int_to_ptr.vmem [resolvable:$true] %s545
          %548 = dma.vmem_to_hbm [thread:$0]  %s546, 64, %s543, %s514
        $region48: #{tpu_custom_call.1} parent=27 // pred_fallthru
          _
        // Predicated region
        $region49: #{tpu_custom_call.1} parent=27 // pred_check
          %p549 = pneg %p166
        $region50: #{tpu_custom_call.1} parent=27 // pred_check_branch
          %551 = sbr.rel (%p549) target = $region52
        $region51: #{tpu_custom_call.1} parent=27 // pred_region
          %s553 = ssub.s32 64, 64
          %554 = vsyncadd %s519, %s553
          %s555 = smul.addr %s32, 64
          %s556 = scalar_lea.hbm %s4, %s555
          %s558 = sshll.u32 %s522, 4
          %s559 = int_to_ptr.vmem [resolvable:$true] %s558
          %561 = dma.vmem_to_hbm [thread:$0]  %s559, 64, %s556, %s519
        $region52: #{tpu_custom_call.1} parent=27 // pred_fallthru
          _
      $region28: #{tpu_custom_call.1} parent=5 // pred_fallthru
        _
      %p562 = scmp.le.s32.totalorder 2, %s23
      // Predicated region
      $region53: #{tpu_custom_call.1} parent=5 // pred_check
        %p563 = pneg %p562
      $region54: #{tpu_custom_call.1} parent=5 // pred_check_branch
        %565 = sbr.rel (%p563) target = $region56
      $region55: #{tpu_custom_call.1} parent=5 // pred_region
        %s566 = ssub.s32 %s23, 2
        // Predicated region
        $region57: #{tpu_custom_call.1} parent=55 // pred_check
          %p567 = pneg %p120
        $region58: #{tpu_custom_call.1} parent=55 // pred_check_branch
          %569 = sbr.rel (%p567) target = $region60
        $region59: #{tpu_custom_call.1} parent=55 // pred_region
          %s570 = sand.u32 %s105, 1
          %s571 = scalar_lea.sflag [#allocation4], %s570
          %s572 = sand.u32 %s105, 1
          %s573 = smul.addr %s572, 4
          %s574 = scalar_lea.vmem [#allocation7], %s573
          %575 = dma.done %s571, 64
        $region60: #{tpu_custom_call.1} parent=55 // pred_fallthru
          _
        // Predicated region
        $region61: #{tpu_custom_call.1} parent=55 // pred_check
          %p576 = pneg %p146
        $region62: #{tpu_custom_call.1} parent=55 // pred_check_branch
          %578 = sbr.rel (%p576) target = $region64
        $region63: #{tpu_custom_call.1} parent=55 // pred_region
          %s579 = sand.u32 %s29, 1
          %s580 = scalar_lea.sflag [#allocation9], %s579
          %s581 = sand.u32 %s131, 1
          %s582 = smul.addr %s581, 4
          %s583 = scalar_lea.vmem [#allocation8], %s582
          %584 = dma.done %s580, 64
        $region64: #{tpu_custom_call.1} parent=55 // pred_fallthru
          _
        // Predicated region
        $region65: #{tpu_custom_call.1} parent=55 // pred_check
          %p585 = pneg %p172
        $region66: #{tpu_custom_call.1} parent=55 // pred_check_branch
          %587 = sbr.rel (%p585) target = $region68
        $region67: #{tpu_custom_call.1} parent=55 // pred_region
          %s588 = sand.u32 %s29, 1
          %s589 = scalar_lea.sflag [#allocation9], %s588
          %s590 = sand.u32 %s157, 1
          %s591 = smul.addr %s590, 4
          %s592 = scalar_lea.vmem [#allocation10], %s591
          %593 = dma.done %s589, 64
        $region68: #{tpu_custom_call.1} parent=55 // pred_fallthru
          _
      $region56: #{tpu_custom_call.1} parent=5 // pred_fallthru
        _
    $region6: #{tpu_custom_call.1} parent=1 // loop_footer
      %s27 = sadd.s32 1, %s23
    $region7: #{tpu_custom_call.1} parent=1 // loop_footer_branch
      %22 = sbr.rel target = $region3
    $region8: #{tpu_custom_call.1} parent=1 // loop_exit
      _
    %594 = vsyncpa [#allocation3], 1
    %s595 = scalar_lea.sflag [#allocation3], 1
    %596 = vsyncpa %s595, 1
    %597 = vsyncpa [#allocation6], 1
    %s598 = scalar_lea.sflag [#allocation6], 1
    %599 = vsyncpa %s598, 1
    %600 = vsyncpa [#allocation4], 1
    %s601 = scalar_lea.sflag [#allocation4], 1
    %602 = vsyncpa %s601, 1
    %603 = vsyncpa [#allocation9], 1
    %s604 = scalar_lea.sflag [#allocation9], 1
    %605 = vsyncpa %s604, 1

</llo_original>
